<compile_context>
chip_gen: v6e
topology: v6e:2x2x1
jax: 0.10.0
libtpu: 0.0.40
codegen_flags: <defaults>
</compile_context>

<pallas_src>
import jax
import jax.numpy as jnp
from jax import lax
from jax.experimental import pallas as pl
from jax.experimental.pallas import tpu as pltpu


_NEG_PAD = -1e30   # finite pad value: exp(pad - max) == 0 with no NaN edge cases


def _round_up(v, m):
    return -(-v // m) * m


def _softmax_lanes(logits_f32, out_dtype):
    """Numerically stable softmax over the (lane-dense) last axis."""
    m = jnp.max(logits_f32, axis=-1, keepdims=True)
    e = jnp.exp(logits_f32 - m)
    denom = jnp.sum(e, axis=-1, keepdims=True)
    inv = pl.reciprocal(denom, approx=True)          # EUP vrcp: ~free slot
    return (e * inv).astype(out_dtype)


def _onehot_softmax_kernel(idx_ref, table_ref, out_ref):
    """One-hot MXU gather + softmax.

    idx_ref:   VMEM (TB, 1)      int32 state indices for this batch tile
    table_ref: VMEM (S, A_pad)   full policy table (same block every step)
    out_ref:   VMEM (TB, A_pad)  action probabilities (padded lanes -> 0)
    """
    tb = idx_ref.shape[0]
    n_states = table_ref.shape[0]

    idx = idx_ref[...]                                          # (TB, 1)
    iota_s = lax.broadcasted_iota(jnp.int32, (tb, n_states), 1)
    # Build the one-hot in the table dtype so bf16 tables use the native
    # bf16 x bf16 MXU path (halves one-hot vreg pressure; rows reproduced
    # bit-exactly in the f32 accumulator since entries are exactly 0/1).
    onehot = (iota_s == idx).astype(table_ref.dtype)
    logits = jnp.dot(onehot, table_ref[...],
                     preferred_element_type=jnp.float32)        # single MXU pass
    out_ref[...] = _softmax_lanes(logits, out_ref.dtype)        # lane-dense store


def _gather_softmax_kernel(idx_ref, table_hbm, out_ref, rows_ref, sem_ref):
    """HBM per-row DMA gather + softmax (for large state spaces).

    idx_ref:   SMEM (Bp,)        int32 (scalar prefetch) all padded indices
    table_hbm: ANY  (S, A_pad)   table left in HBM, never VMEM-resident
    out_ref:   VMEM (TB, A_pad)  probabilities for this batch tile
    rows_ref:  VMEM (TB, A_pad)  scratch holding the gathered rows
    sem_ref:   DMA sems (TB,)
    """
    tb = out_ref.shape[0]
    base = pl.program_id(0) * tb

    @pl.loop(0, tb)
    def _issue(r):
        srow = idx_ref[base + r]
        pltpu.make_async_copy(table_hbm.at[pl.ds(srow, 1), :],
                              rows_ref.at[pl.ds(r, 1), :],
                              sem_ref.at[r]).start()

    @pl.loop(0, tb)
    def _wait(r):
        pltpu.make_async_copy(table_hbm.at[pl.ds(0, 1), :],
                              rows_ref.at[pl.ds(r, 1), :],
                              sem_ref.at[r]).wait()

    out_ref[...] = _softmax_lanes(rows_ref[...].astype(jnp.float32),
                                  out_ref.dtype)


def _vmem_budget_bytes():
    """Per-generation VMEM budget: capacity minus compiler-scratch headroom."""
    try:
        cap = int(pltpu.get_tpu_info().vmem_capacity_bytes)
    except Exception:
        cap = 64 << 20      # conservative fallback (v7x-sized)
    return max(cap - (12 << 20), 32 << 20)


def table_forward(x, table, *, tb=None, method=None):
    """Pallas equivalent of Table.forward; returns the Categorical `probs` (B, A)."""
    B = x.shape[0]
    S, A = table.shape
    dsize = jnp.dtype(table.dtype).itemsize
    a_pad = _round_up(max(A, 128), 128)
    budget = _vmem_budget_bytes()

    # Lane-dense action axis: pad columns with a large finite negative so the
    # padded lanes contribute exp(...) == 0 to the softmax.
    table_p = table
    if a_pad != A:
        table_p = jnp.pad(table, ((0, 0), (0, a_pad - A)),
                          constant_values=_NEG_PAD)

    # PyTorch Embedding raises on OOB indices; clip to stay in bounds here.
    idx = jnp.clip(x.astype(jnp.int32), 0, S - 1)

    # The pipeline double-buffers the table block even though its block index
    # never changes; if that would crowd VMEM, switch to the HBM-gather path.
    table_vmem = 2 * S * a_pad * dsize
    if method is None:
        method = "onehot" if table_vmem <= budget // 2 else "gather"

    b_align = _round_up(max(B, 8), 8)

    if method == "onehot":
        if tb is None:
            tb = 8
            for cand in (1024, 512, 256, 128, 64, 32, 16, 8):
                t = min(cand, b_align)
                foot = (table_vmem                          # table, 2x buffered
                        + 2 * t * 128 * 4                   # idx block (lane-padded)
                        + 2 * t * a_pad * dsize             # output block
                        + t * _round_up(S, 128) * 4         # one-hot working set
                        + 2 * t * a_pad * 4)                # exp/probs temporaries
                if foot <= budget:
                    tb = t
                    break
        tb = min(_round_up(tb, 8), b_align)
        bp = _round_up(B, tb)
        idx2 = jnp.pad(idx, (0, bp - B)).reshape(bp, 1)

        probs = pl.pallas_call(
            _onehot_softmax_kernel,
            out_shape=jax.ShapeDtypeStruct((bp, a_pad), table.dtype),
            grid_spec=pltpu.PrefetchScalarGridSpec(
                num_scalar_prefetch=0,
                grid=(bp // tb,),
                in_specs=[
                    pl.BlockSpec((tb, 1), lambda i: (i, 0)),     # batch tile of idx
                    pl.BlockSpec((S, a_pad), lambda i: (0, 0)),  # full table, reused
                ],
                out_specs=pl.BlockSpec((tb, a_pad), lambda i: (i, 0)),
            ),
            compiler_params=pltpu.CompilerParams(
                dimension_semantics=("parallel",),   # shards batch across TCs on v7x
                vmem_limit_bytes=budget,
            ),
        )(idx2, table_p)

    elif method == "gather":
        if tb is None:
            tb = 128                                  # <=128 row-DMAs in flight/tile
        tb = min(_round_up(tb, 8), b_align)
        bp = _round_up(B, tb)
        idx1 = jnp.pad(idx, (0, bp - B))              # (bp,) -> SMEM scalar prefetch

        probs = pl.pallas_call(
            _gather_softmax_kernel,
            out_shape=jax.ShapeDtypeStruct((bp, a_pad), table.dtype),
            grid_spec=pltpu.PrefetchScalarGridSpec(
                num_scalar_prefetch=1,
                grid=(bp // tb,),
                in_specs=[pl.BlockSpec(memory_space=pl.ANY)],    # table stays in HBM
                out_specs=pl.BlockSpec((tb, a_pad), lambda i, idx_ref: (i, 0)),
                scratch_shapes=[
                    pltpu.VMEM((tb, a_pad), table.dtype),
                    pltpu.SemaphoreType.DMA((tb,)),
                ],
            ),
            compiler_params=pltpu.CompilerParams(
                dimension_semantics=("parallel",),
                vmem_limit_bytes=budget,
            ),
        )(idx1, table_p)
    else:
        raise ValueError(f"unknown method {method!r}")

    # TODO(synk): torch.distributions.Categorical has no Pallas equivalent;
    # we return its `probs` matrix.
    return probs[:B, :A]


if __name__ == "__main__":
    state_size = 16
    action_size = 8
    batch = 8

    key = jax.random.PRNGKey(0)
    k_idx, k_tbl, k_big = jax.random.split(key, 3)

    x = jax.random.randint(k_idx, (batch,), 0, state_size, dtype=jnp.int32)

    def ref_probs(xi, tbl):
        return jax.nn.softmax(tbl.astype(jnp.float32)[xi], axis=-1)

    # 1) Parameter as in Table.__init__: zero table -> uniform probabilities.
    table_zero = jnp.zeros((state_size, action_size), jnp.float32)
    p0 = jax.block_until_ready(table_forward(x, table_zero))
    assert p0.shape == (batch, action_size)
    assert jnp.allclose(p0, ref_probs(x, table_zero), atol=2e-3), "zero-table mismatch"

    # 2) Non-trivial table: one-hot MXU gather + softmax path.
    table_rand = 0.1 * jax.random.normal(k_tbl, (state_size, action_size), jnp.float32)
    p1 = jax.block_until_ready(table_forward(x, table_rand))
    assert jnp.allclose(p1, ref_probs(x, table_rand), atol=2e-3), "random-table mismatch"

    # 3) Ragged batch (wrapper-side padding + slicing).
    p2 = jax.block_until_ready(table_forward(x[:5], table_rand))
    assert p2.shape == (5, action_size)
    assert jnp.allclose(p2, ref_probs(x[:5], table_rand), atol=2e-3), "ragged mismatch"

    # 4) bf16 table -> bf16 one-hot feeding the native bf16 MXU path.
    table_bf16 = table_rand.astype(jnp.bfloat16)
    p3 = jax.block_until_ready(table_forward(x, table_bf16))
    assert p3.dtype == jnp.bfloat16
    assert jnp.allclose(p3.astype(jnp.float32), ref_probs(x, table_bf16),
                        atol=1e-2), "bf16 mismatch"

    # 5) Large-state-space path: table stays in HBM, per-row DMA gather
    #    (forced here; chosen automatically when the table would crowd VMEM).
    big_s = 512
    table_big = 0.1 * jax.random.normal(k_big, (big_s, action_size), jnp.float32)
    x_big = jax.random.randint(k_idx, (16,), 0, big_s, dtype=jnp.int32)
    p4 = jax.block_until_ready(table_forward(x_big, table_big, method="gather"))
    assert p4.shape == (16, action_size)
    assert jnp.allclose(p4, ref_probs(x_big, table_big), atol=2e-3), "gather mismatch"

    print("KERNEL_OK")
</pallas_src>

<mosaic_0001>
module attributes {stable_mosaic.version = 11 : i64} {
  func.func @_onehot_softmax_kernel(%arg0: i32, %arg1: memref<8x1xi32, #tpu.memory_space<vmem>>, %arg2: memref<16x128xf32, #tpu.memory_space<vmem>>, %arg3: memref<8x128xf32, #tpu.memory_space<vmem>>) attributes {dimension_semantics = [#tpu.dimension_semantics<parallel>], iteration_bounds = array<i64: 1>, scalar_prefetch = 0 : i64, scratch_operands = 0 : i64, tpu.core_type = #tpu.core_type<tc>, window_params = [{transform_indices = @transform_0, window_bounds = array<i64: 8, 1>}, {pipeline_mode = #tpu.pipeline_mode<synchronous>, transform_indices = @transform_1, window_bounds = array<i64: 16, 128>}, {transform_indices = @transform_2, window_bounds = array<i64: 8, 128>}]} {
    %c0 = arith.constant 0 : index
    %c0_0 = arith.constant 0 : index
    %0 = vector.load %arg1[%c0, %c0_0] : memref<8x1xi32, #tpu.memory_space<vmem>>, vector<8x1xi32>
    %1 = tpu.iota {dimensions = array<i32: 1>} : vector<8x16xi32>
    %2 = vector.broadcast %0 : vector<8x1xi32> to vector<8x16xi32>
    %3 = arith.cmpi eq, %1, %2 : vector<8x16xi32>
    %4 = arith.extui %3 : vector<8x16xi1> to vector<8x16xi32>
    %5 = arith.sitofp %4 : vector<8x16xi32> to vector<8x16xf32>
    %c0_1 = arith.constant 0 : index
    %c0_2 = arith.constant 0 : index
    %6 = vector.load %arg2[%c0_1, %c0_2] : memref<16x128xf32, #tpu.memory_space<vmem>>, vector<16x128xf32>
    %cst = arith.constant dense<0.000000e+00> : vector<8x128xf32>
    %7 = tpu.matmul %5, %6, %cst {dimension_numbers = #tpu.dot_dimension_numbers<[1], [0], [0], [1], [0, 0, 1, 1], [], []>} : vector<8x16xf32>, vector<16x128xf32>, vector<8x128xf32> -> vector<8x128xf32>
    %cst_3 = arith.constant dense<0xFF800000> : vector<8xf32>
    %8 = vector.multi_reduction <maximumf>, %7, %cst_3 [1] : vector<8x128xf32> to vector<8xf32>
    %9 = vector.shape_cast %8 : vector<8xf32> to vector<8x1xf32>
    %10 = vector.broadcast %9 : vector<8x1xf32> to vector<8x128xf32>
    %11 = arith.subf %7, %10 : vector<8x128xf32>
    %12 = math.exp %11 : vector<8x128xf32>
    %cst_4 = arith.constant dense<0.000000e+00> : vector<8xf32>
    %13 = vector.multi_reduction <add>, %12, %cst_4 [1] : vector<8x128xf32> to vector<8xf32>
    %14 = vector.shape_cast %13 : vector<8xf32> to vector<8x1xf32>
    %15 = tpu.reciprocal %14 {approx = true} : vector<8x1xf32> -> vector<8x1xf32>
    %16 = vector.broadcast %15 : vector<8x1xf32> to vector<8x128xf32>
    %17 = arith.mulf %12, %16 : vector<8x128xf32>
    %c0_5 = arith.constant 0 : index
    %c0_6 = arith.constant 0 : index
    %18 = vector.load %arg3[%c0_5, %c0_6] : memref<8x128xf32, #tpu.memory_space<vmem>>, vector<8x128xf32>
    tpu.vector_store %arg3[%c0_5, %c0_6], %17 {strides = array<i32>} : memref<8x128xf32, #tpu.memory_space<vmem>>, vector<8x128xf32>,
    return
  }
  func.func @transform_0(%arg0: i32) -> (i32, i32) {
    %c0_i32 = arith.constant 0 : i32
    %c0_i32_0 = arith.constant 0 : i32
    return %arg0, %c0_i32 : i32, i32
  }
  func.func @transform_1(%arg0: i32) -> (i32, i32) {
    %c0_i32 = arith.constant 0 : i32
    %c0_i32_0 = arith.constant 0 : i32
    %c0_i32_1 = arith.constant 0 : i32
    return %c0_i32, %c0_i32_0 : i32, i32
  }
  func.func @transform_2(%arg0: i32) -> (i32, i32) {
    %c0_i32 = arith.constant 0 : i32
    %c0_i32_0 = arith.constant 0 : i32
    return %arg0, %c0_i32 : i32, i32
  }
}

</mosaic_0001>

<llo_original>
// kernel: tpu_custom_call.1
$region0: #{tpu_custom_call.1}
  #allocation0 [shape = 'u32[]', space=smem, size = 0x4, offset = 0x4, fixed_abs, tag = 'smem constant byte address 0x4 - core index']
  #allocation1 [shape = 'u32[144,128]{1,0:T(1,128)}', space=vmem, size = 0x12000, scoped, tag = 'internal scratch']
  %s0 = inlined_call_operand.vmem [shape: s32[8,1], index: 0, kind: input, shape index: {}]
  %s1 = inlined_call_operand.hbm [shape: f32[16,128], index: 1, kind: input, shape index: {}]
  %s2 = inlined_call_operand.hbm [shape: f32[8,128], index: 2, kind: output, shape index: {}]
  %s3 = sld [smem:[#allocation0]]
  $region22: #{tpu_custom_call.1} parent=0
    _
  %s5 = ssub.s32 1, %s3
  %s6 = scalar_select 0, %s5, %s3
  $region1: #{tpu_custom_call.1} parent=0
    #allocation2 [shape = 'u8[8192]{0}', space=vmem, size = 0x2000, scoped, tag = 'input window, operand 1, single buffered']
    #allocation3 [shape = 's32[1]{0}', space=sflag, size = 0x4, scoped, tag = 'scoped memory for tpu_custom_call.1']
    #allocation4 [shape = 's32[1]{0}', space=sflag, size = 0x4, scoped, tag = 'scoped memory for tpu_custom_call.1']
    #allocation5 [shape = 'u8[4096]{0}', space=vmem, size = 0x1000, scoped, tag = 'output window, operand 0, single buffered']
    %7 = vsyncpa [#allocation3], 0
    %8 = vsyncpa [#allocation4], 0
    // Predicated region
    $region2: #{tpu_custom_call.1} parent=1 // pred_check
      _
    $region3: #{tpu_custom_call.1} parent=1 // pred_check_branch
      %10 = sbr.rel (0) target = $region5
    $region4: #{tpu_custom_call.1} parent=1 // pred_region
      _
    $region5: #{tpu_custom_call.1} parent=1 // pred_fallthru
      _
    // Predicated region
    $region6: #{tpu_custom_call.1} parent=1 // pred_check
      _
    $region7: #{tpu_custom_call.1} parent=1 // pred_check_branch
      %12 = sbr.rel (0) target = $region9
    $region8: #{tpu_custom_call.1} parent=1 // pred_region
      %s14 = ssub.s32 256, 256
      %15 = vsyncadd [#allocation3], %s14
      %s16 = sshll.u32 [#allocation2], 4
      %s17 = int_to_ptr.vmem [resolvable:$true] %s16
      %22 = dma.hbm_to_vmem [thread:$0]  %s1, 256, %s17, [#allocation3], 128, 128, 8
    $region9: #{tpu_custom_call.1} parent=1 // pred_fallthru
      _
    // Predicated region
    $region10: #{tpu_custom_call.1} parent=1 // pred_check
      _
    $region11: #{tpu_custom_call.1} parent=1 // pred_check_branch
      %24 = sbr.rel (0) target = $region13
    $region12: #{tpu_custom_call.1} parent=1 // pred_region
      %25 = dma.done [#allocation3], 256
    $region13: #{tpu_custom_call.1} parent=1 // pred_fallthru
      _
    %v26 = vld [vmem:[%s0] sm:$0xff]
    %v27 = vlaneseq
    %v28 = vand.u32 %v27, 127
    %29 = vset.pattern.permute.xlu0 0
    %30 = vperm.xlu0 %29, %v26
    %v31 = vpop.permute.xlu0 %30
    %vm32 = vcmp.eq.s32.totalorder %v28, %v31
    %v33 = vsel %vm32, 1, 0
    %v34 = vcvt.s32.f32 %v33
    %v35 = vld [vmem:[#allocation2] sm:$0xff]
    %v36 = vld [vmem:[#allocation2 + $0x8] sm:$0xff]
    %vm37 = vcmask 130048
    %v39 = vsel %vm37, %v34, 0
    %41 = vmatprep.subr.mxu0 0.0
    %42 = vmatpush1.msra.mxu0 0.0
    %43 = vmatprep.subr.mxu0 0.0
    %44 = vmatpush1.msra.mxu0 0.0
    %45 = vmatprep.subr.mxu0 0.0
    %46 = vmatpush1.msra.mxu0 0.0
    %47 = vmatprep.subr.mxu0 0.0
    %48 = vmatpush1.msra.mxu0 0.0
    %49 = vmatprep.subr.mxu0 0.0
    %50 = vmatpush1.msra.mxu0 0.0
    %51 = vmatprep.subr.mxu0 0.0
    %52 = vmatpush1.msra.mxu0 0.0
    %53 = vmatprep.subr.mxu0 0.0
    %54 = vmatpush1.msra.mxu0 0.0
    %55 = vmatprep.subr.mxu0 0.0
    %56 = vmatpush1.msra.mxu0 0.0
    %57 = vmatprep.subr.mxu0 0.0
    %58 = vmatpush1.msra.mxu0 0.0
    %59 = vmatprep.subr.mxu0 0.0
    %60 = vmatpush1.msra.mxu0 0.0
    %61 = vmatprep.subr.mxu0 0.0
    %62 = vmatpush1.msra.mxu0 0.0
    %63 = vmatprep.subr.mxu0 0.0
    %64 = vmatpush1.msra.mxu0 0.0
    %65 = vmatprep.subr.mxu0 0.0
    %66 = vmatpush1.msra.mxu0 0.0
    %67 = vmatprep.subr.mxu0 0.0
    %68 = vmatpush1.msra.mxu0 0.0
    %69 = vmatprep.subr.mxu0 0.0
    %70 = vmatpush1.msra.mxu0 %v36
    %71 = vmatprep.subr.mxu0 0.0
    %72 = vmatpush1.msra.mxu0 %v35
    %73 = vmatprep.subr.mxu0 0.0
    %74 = vmatpush2.msra.mxu0 0.0
    %75 = vmatprep.subr.mxu0 0.0
    %76 = vmatpush2.msra.mxu0 0.0
    %77 = vmatprep.subr.mxu0 0.0
    %78 = vmatpush2.msra.mxu0 0.0
    %79 = vmatprep.subr.mxu0 0.0
    %80 = vmatpush2.msra.mxu0 0.0
    %81 = vmatprep.subr.mxu0 0.0
    %82 = vmatpush2.msra.mxu0 0.0
    %83 = vmatprep.subr.mxu0 0.0
    %84 = vmatpush2.msra.mxu0 0.0
    %85 = vmatprep.subr.mxu0 0.0
    %86 = vmatpush2.msra.mxu0 0.0
    %87 = vmatprep.subr.mxu0 0.0
    %88 = vmatpush2.msra.mxu0 0.0
    %89 = vmatprep.subr.mxu0 0.0
    %90 = vmatpush2.msra.mxu0 0.0
    %91 = vmatprep.subr.mxu0 0.0
    %92 = vmatpush2.msra.mxu0 0.0
    %93 = vmatprep.subr.mxu0 0.0
    %94 = vmatpush2.msra.mxu0 0.0
    %95 = vmatprep.subr.mxu0 0.0
    %96 = vmatpush2.msra.mxu0 0.0
    %97 = vmatprep.subr.mxu0 0.0
    %98 = vmatpush2.msra.mxu0 0.0
    %99 = vmatprep.subr.mxu0 0.0
    %100 = vmatpush2.msra.mxu0 0.0
    %101 = vmatprep.subr.mxu0 0.0
    %102 = vmatpush2.msra.mxu0 0.0
    %103 = vmatprep.subr.mxu0 0.0
    %104 = vmatpush2.msra.mxu0 0.0
    %105 = vmatprep.mubr.f32.mxu0 0.0
    %106 = vmatmul.mubr.f32.gmra.mxu0 %v39
    %v107 = vpop.f32.mrf.mxu0
    %v108 = vadd.f32 0.0, %v107
    %v109 = vpop.f32.mrf.mxu0
    %110 = vdwg.mxu0
    %111 = vmax.xlane.f32.xlu0 %v108
    %v112 = vpop.xlane.xlu0 %111
    %v113 = vsub.f32 %v108, %v112
    %v114 = vmul.f32 %v113, 1.442695
    %v115 = vpow.pop %v114
    %116 = vadd.xlane.f32.xlu0 %v115
    %v117 = vpop.xlane.xlu0 %116
    %v118 = vrcp.pop %v117
    %v119 = vmul.f32 %v115, %v118
    %120 = vst [vmem:[#allocation5] sm:$0xff] %v119
    // Predicated region
    $region14: #{tpu_custom_call.1} parent=1 // pred_check
      _
    $region15: #{tpu_custom_call.1} parent=1 // pred_check_branch
      %122 = sbr.rel (0) target = $region17
    $region16: #{tpu_custom_call.1} parent=1 // pred_region
      %s124 = ssub.s32 128, 128
      %125 = vsyncadd [#allocation4], %s124
      %s127 = sshll.u32 [#allocation5], 4
      %s128 = int_to_ptr.vmem [resolvable:$true] %s127
      %130 = dma.vmem_to_hbm [thread:$0]  %s128, 128, %s2, [#allocation4]
    $region17: #{tpu_custom_call.1} parent=1 // pred_fallthru
      _
    // Predicated region
    $region18: #{tpu_custom_call.1} parent=1 // pred_check
      _
    $region19: #{tpu_custom_call.1} parent=1 // pred_check_branch
      %132 = sbr.rel (0) target = $region21
    $region20: #{tpu_custom_call.1} parent=1 // pred_region
      %133 = dma.done [#allocation4], 128
    $region21: #{tpu_custom_call.1} parent=1 // pred_fallthru
      _
    %134 = vsyncpa [#allocation3], 1
    %135 = vsyncpa [#allocation4], 1

</llo_original>
